<compile_context>
chip_gen: v5e
topology: v5e:2x2
jax: 0.10.0
libtpu: 0.0.40
codegen_flags: <defaults>
</compile_context>

<pallas_src>
import functools

import jax
import jax.numpy as jnp
from jax.experimental import pallas as pl
from jax.experimental.pallas import tpu as pltpu

# Full-precision f32 matmuls in both the kernel and the pure-JAX reference so
# the deterministic argmax matches the PyTorch f32 forward bit-for-bit-ish.
jax.config.update("jax_default_matmul_precision", "highest")


def _round_up(x, m):
    return ((x + m - 1) // m) * m


def _plan_tiles(batch, tile_m):
    """Pick (TM, padded_B): TM a multiple of 8, padded_B a multiple of TM.

    Preference order:
      1. tiny batches            -> one full-extent block (pad at most to x8),
      2. divisor tile in [128, tile_m] with >= 2 grid steps
         (no wrapper pad copy; >= 2 steps lets ("parallel",) use both
          TensorCores on v7x),
      3. batch still fits one tile -> single full-extent block,
      4. awkward large sizes     -> fixed 512 tile + pad.
    """
    bp = _round_up(batch, 8)
    if bp <= 128:
        return bp, bp
    hi = min(tile_m, bp // 2) // 8 * 8
    for t in range(hi, 127, -8):
        if bp % t == 0:
            return t, bp
    if bp <= tile_m:
        return bp, bp
    tm = min(tile_m, 512)
    return tm, _round_up(batch, tm)


def _agent_act_kernel(x_ref, l1w_ref, l2w_ref, hdw_ref, b_ref, out_ref,
                      *, num_actions):
    wdt = l1w_ref.dtype                    # matmul operand dtype (f32 or bf16)
    h2_dim = l2w_ref.shape[0]              # fused actor|critic width (2H)

    x = x_ref[...]                         # (TM, obs_dim) f32

    # --- fused layer 1: columns [0,H) actor, [H,2H) critic ------------------
    h1 = jnp.tanh(
        jnp.dot(x.astype(wdt), l1w_ref[...],
                preferred_element_type=jnp.float32) + b_ref[0:1, :h2_dim])

    # --- fused layer 2: block-diag(wa2, wc2) --------------------------------
    h2 = jnp.tanh(
        jnp.dot(h1.astype(wdt), l2w_ref[...],
                preferred_element_type=jnp.float32) + b_ref[1:2, :h2_dim])

    # --- fused head: lane 0 = value, lanes [1, 1+A) = logits, rest = 0 pad --
    head = (jnp.dot(h2.astype(wdt), hdw_ref[...],
                    preferred_element_type=jnp.float32) + b_ref[2:3, :])

    lane = jax.lax.broadcasted_iota(jnp.int32, head.shape, 1)
    valid = jnp.logical_and(lane >= 1, lane <= num_actions)

    # numerically stable log_softmax over the valid logit lanes only
    logits = jnp.where(valid, head, jnp.float32(-1e30))
    m = jnp.max(logits, axis=-1, keepdims=True)
    z = logits - m
    lse = jnp.log(jnp.sum(jnp.where(valid, jnp.exp(z), 0.0),
                          axis=-1, keepdims=True))

    # deterministic action = argmax over valid lanes (first occurrence,
    # matching jnp.argmax); act_lane is in [1, A]
    is_max = jnp.logical_and(valid, logits == m)
    act_lane = jnp.min(jnp.where(is_max, lane, num_actions + 1),
                       axis=-1, keepdims=True)                     # (TM, 1) i32

    logp = jnp.sum(jnp.where(lane == act_lane, z - lse, 0.0),
                   axis=-1, keepdims=True)                         # (TM, 1)
    value = head[:, 0:1]                                           # (TM, 1)
    action = (act_lane - 1).astype(jnp.float32)    # exact integer (A < 2**24)

    # lane-compressed output: only 3 lanes per row (value, logp, action)
    out_lane = jax.lax.broadcasted_iota(jnp.int32, (x.shape[0], 3), 1)
    out = jnp.where(out_lane == 0, value, 0.0)
    out = jnp.where(out_lane == 1, logp, out)
    out = jnp.where(out_lane == 2, action, out)
    out_ref[...] = out
    # TODO(synk): stochastic sampling (deterministic=False) would need
    # pltpu.prng_* + Gumbel-max inside the kernel; only the deterministic
    # (mode) branch of Agent.act is implemented here.


def pack_params(params, obs_dim, hidden, num_actions, dtype=jnp.float32):
    """Pack the 12 Agent parameters into 4 contiguous slabs.

    Head slab layout: lane 0 = value head, lanes [1, 1+A) = logits head.
    Use dtype=jnp.bfloat16 on v6e/v7x for full-rate MXU (argmax ties may flip).
    """
    H2 = 2 * hidden                                  # fused width (128 here)
    W = max(H2, _round_up(num_actions + 1, 128))     # keep at exactly 128
    assert num_actions + 1 <= W

    # layer-1 slab: columns [0,H) actor, [H,2H) critic
    l1w = jnp.concatenate([params["wa1"], params["wc1"]], axis=1)    # (obs, 2H)

    # layer-2 slab: block-diagonal
    l2w = jnp.zeros((H2, H2), jnp.float32)
    l2w = l2w.at[:hidden, :hidden].set(params["wa2"])
    l2w = l2w.at[hidden:, hidden:].set(params["wc2"])

    # head slab: lane 0 <- value (critic half), lanes 1..A <- logits (actor half)
    hdw = jnp.zeros((H2, W), jnp.float32)
    hdw = hdw.at[hidden:, 0:1].set(params["wv"])
    hdw = hdw.at[:hidden, 1:1 + num_actions].set(params["wd"])

    # bias slab: row0 = layer1, row1 = layer2, row2 = head (padded lanes = 0)
    bias = jnp.zeros((3, W), jnp.float32)
    bias = bias.at[0, :hidden].set(params["ba1"][0])
    bias = bias.at[0, hidden:H2].set(params["bc1"][0])
    bias = bias.at[1, :hidden].set(params["ba2"][0])
    bias = bias.at[1, hidden:H2].set(params["bc2"][0])
    bias = bias.at[2, 0].set(params["bv"][0, 0])
    bias = bias.at[2, 1:1 + num_actions].set(params["bd"][0])

    return (l1w.astype(dtype), l2w.astype(dtype), hdw.astype(dtype),
            bias.astype(jnp.float32))


def agent_act(inputs, rnn_hxs, masks, packed, *, num_actions, tile_m=1024):
    """Returns (action, log_probs, value, rnn_hxs) — matches Agent.act outputs."""
    del masks  # MLPBase is non-recurrent: masks unused, rnn_hxs passes through.
    assert num_actions < (1 << 24)   # action round-trips exactly through f32
    B, obs_dim = inputs.shape
    l1w, l2w, hdw, bias = packed

    TM, padded_B = _plan_tiles(B, tile_m)
    if padded_B != B:                # only for batches that aren't nice sizes
        inputs = jnp.pad(inputs, ((0, padded_B - B), (0, 0)))
    grid = (padded_B // TM,)

    out = pl.pallas_call(
        functools.partial(_agent_act_kernel, num_actions=num_actions),
        out_shape=jax.ShapeDtypeStruct((padded_B, 3), jnp.float32),
        grid_spec=pltpu.PrefetchScalarGridSpec(
            num_scalar_prefetch=0,
            grid=grid,
            in_specs=[
                pl.BlockSpec((TM, obs_dim), lambda i: (i, 0)),    # obs stream
                pl.BlockSpec(l1w.shape, lambda i: (0, 0)),        # resident
                pl.BlockSpec(l2w.shape, lambda i: (0, 0)),        # resident
                pl.BlockSpec(hdw.shape, lambda i: (0, 0)),        # resident
                pl.BlockSpec(bias.shape, lambda i: (0, 0)),       # resident
            ],
            out_specs=pl.BlockSpec((TM, 3), lambda i: (i, 0)),    # 12 B / row
        ),
        compiler_params=pltpu.CompilerParams(
            dimension_semantics=("parallel",)),
    )(inputs, l1w, l2w, hdw, bias)

    value = out[:B, 0:1]
    log_probs = out[:B, 1:2]
    action = out[:B, 2:3].astype(jnp.int32)
    return action, log_probs, value, rnn_hxs


# ----------------------------- reference / setup -----------------------------

def init_params(key, obs_dim, hidden, num_actions):
    ks = jax.random.split(key, 6)

    def lin(kw, fan_in, fan_out):
        return jax.random.normal(kw, (fan_in, fan_out), jnp.float32) / jnp.sqrt(fan_in)

    return {
        "wa1": lin(ks[0], obs_dim, hidden), "ba1": jnp.zeros((1, hidden), jnp.float32),
        "wa2": lin(ks[1], hidden, hidden),  "ba2": jnp.zeros((1, hidden), jnp.float32),
        "wc1": lin(ks[2], obs_dim, hidden), "bc1": jnp.zeros((1, hidden), jnp.float32),
        "wc2": lin(ks[3], hidden, hidden),  "bc2": jnp.zeros((1, hidden), jnp.float32),
        "wv":  lin(ks[4], hidden, 1),       "bv":  jnp.zeros((1, 1), jnp.float32),
        "wd":  lin(ks[5], hidden, num_actions),
        "bd":  jnp.zeros((1, num_actions), jnp.float32),
    }


def agent_act_ref(inputs, params):
    ha = jnp.tanh(inputs @ params["wa1"] + params["ba1"])
    af = jnp.tanh(ha @ params["wa2"] + params["ba2"])
    hc = jnp.tanh(inputs @ params["wc1"] + params["bc1"])
    hc = jnp.tanh(hc @ params["wc2"] + params["bc2"])
    value = hc @ params["wv"] + params["bv"]
    logits = af @ params["wd"] + params["bd"]
    action = jnp.argmax(logits, axis=-1, keepdims=True).astype(jnp.int32)
    logp_all = jax.nn.log_softmax(logits, axis=-1)
    logp = jnp.take_along_axis(logp_all, action, axis=-1)
    return action, logp, value


if __name__ == "__main__":
    OBS_DIM, HIDDEN, NUM_ACTIONS = 32, 64, 8

    key = jax.random.PRNGKey(0)
    k_obs, k_params = jax.random.split(key)

    params = init_params(k_params, OBS_DIM, HIDDEN, NUM_ACTIONS)
    packed_f32 = pack_params(params, OBS_DIM, HIDDEN, NUM_ACTIONS)      # exact
    packed_bf16 = pack_params(params, OBS_DIM, HIDDEN, NUM_ACTIONS,
                              dtype=jnp.bfloat16)                       # v6e/v7x

    # f32 path: exact action parity + tight value/logp tolerance.
    # B=8 exercises the tiny single-block path; B=256 exercises the
    # multi-step grid (TM=128, 2 parallel steps).
    for B in (8, 256):
        inputs = jax.random.normal(jax.random.fold_in(k_obs, B),
                                   (B, OBS_DIM), jnp.float32)
        rnn_hxs = jnp.zeros((B, 1), jnp.float32)   # non-recurrent -> size-1 hxs
        masks = jnp.ones((B, 1), jnp.float32)

        act_fn = jax.jit(functools.partial(agent_act, packed=packed_f32,
                                           num_actions=NUM_ACTIONS))
        action, log_probs, value, rnn_hxs_out = act_fn(inputs, rnn_hxs, masks)
        jax.block_until_ready((action, log_probs, value, rnn_hxs_out))

        assert action.shape == (B, 1) and action.dtype == jnp.int32
        assert log_probs.shape == (B, 1) and value.shape == (B, 1)
        assert rnn_hxs_out.shape == rnn_hxs.shape

        a_ref, lp_ref, v_ref = agent_act_ref(inputs, params)
        assert bool(jnp.all(action == a_ref))
        assert bool(jnp.allclose(value, v_ref, atol=2e-3, rtol=2e-3))
        assert bool(jnp.allclose(log_probs, lp_ref, atol=2e-3, rtol=2e-3))

    # bf16 weight path (full-rate MXU on v6e/v7x): near-tied logits may flip
    # the argmax, so only value / log_probs are checked, with loose tolerance.
    B = 256
    inputs = jax.random.normal(jax.random.fold_in(k_obs, B),
                               (B, OBS_DIM), jnp.float32)
    act_bf16 = jax.jit(functools.partial(agent_act, packed=packed_bf16,
                                         num_actions=NUM_ACTIONS))
    a16, lp16, v16, _ = act_bf16(inputs, jnp.zeros((B, 1), jnp.float32),
                                 jnp.ones((B, 1), jnp.float32))
    jax.block_until_ready((a16, lp16, v16))
    _, lp_ref, v_ref = agent_act_ref(inputs, params)
    assert bool(jnp.allclose(v16, v_ref, atol=5e-2, rtol=5e-2))
    assert bool(jnp.allclose(lp16, lp_ref, atol=5e-2, rtol=5e-2))

    print("KERNEL_OK")
</pallas_src>

<mosaic_0001>
module attributes {stable_mosaic.version = 11 : i64} {
  func.func @_agent_act_kernel(%arg0: i32, %arg1: memref<8x32xf32, #tpu.memory_space<vmem>>, %arg2: memref<32x128xf32, #tpu.memory_space<vmem>>, %arg3: memref<128x128xf32, #tpu.memory_space<vmem>>, %arg4: memref<128x128xf32, #tpu.memory_space<vmem>>, %arg5: memref<3x128xf32, #tpu.memory_space<vmem>>, %arg6: memref<8x3xf32, #tpu.memory_space<vmem>>) attributes {dimension_semantics = [#tpu.dimension_semantics<parallel>], iteration_bounds = array<i64: 1>, scalar_prefetch = 0 : i64, scratch_operands = 0 : i64, tpu.core_type = #tpu.core_type<tc>, window_params = [{transform_indices = @transform_0, window_bounds = array<i64: 8, 32>}, {pipeline_mode = #tpu.pipeline_mode<synchronous>, transform_indices = @transform_1, window_bounds = array<i64: 32, 128>}, {pipeline_mode = #tpu.pipeline_mode<synchronous>, transform_indices = @transform_2, window_bounds = array<i64: 128, 128>}, {pipeline_mode = #tpu.pipeline_mode<synchronous>, transform_indices = @transform_3, window_bounds = array<i64: 128, 128>}, {pipeline_mode = #tpu.pipeline_mode<synchronous>, transform_indices = @transform_4, window_bounds = array<i64: 3, 128>}, {transform_indices = @transform_5, window_bounds = array<i64: 8, 3>}]} {
    %c0 = arith.constant 0 : index
    %c0_0 = arith.constant 0 : index
    %0 = vector.load %arg1[%c0, %c0_0] : memref<8x32xf32, #tpu.memory_space<vmem>>, vector<8x32xf32>
    %c0_1 = arith.constant 0 : index
    %c0_2 = arith.constant 0 : index
    %1 = vector.load %arg2[%c0_1, %c0_2] : memref<32x128xf32, #tpu.memory_space<vmem>>, vector<32x128xf32>
    %cst = arith.constant dense<0.000000e+00> : vector<8x128xf32>
    %2 = tpu.matmul %0, %1, %cst {dimension_numbers = #tpu.dot_dimension_numbers<[1], [0], [0], [1], [0, 0, 1, 1], [], []>, precision = #tpu.contract_precision<fp32>} : vector<8x32xf32>, vector<32x128xf32>, vector<8x128xf32> -> vector<8x128xf32>
    %c0_3 = arith.constant 0 : index
    %c0_4 = arith.constant 0 : index
    %3 = vector.load %arg5[%c0_3, %c0_4] : memref<3x128xf32, #tpu.memory_space<vmem>>, vector<1x128xf32>
    %4 = vector.broadcast %3 : vector<1x128xf32> to vector<8x128xf32>
    %5 = arith.addf %2, %4 : vector<8x128xf32>
    %6 = math.tanh %5 : vector<8x128xf32>
    %c0_5 = arith.constant 0 : index
    %c0_6 = arith.constant 0 : index
    %7 = vector.load %arg3[%c0_5, %c0_6] : memref<128x128xf32, #tpu.memory_space<vmem>>, vector<128x128xf32>
    %cst_7 = arith.constant dense<0.000000e+00> : vector<8x128xf32>
    %8 = tpu.matmul %6, %7, %cst_7 {dimension_numbers = #tpu.dot_dimension_numbers<[1], [0], [0], [1], [0, 0, 1, 1], [], []>, precision = #tpu.contract_precision<fp32>} : vector<8x128xf32>, vector<128x128xf32>, vector<8x128xf32> -> vector<8x128xf32>
    %c1 = arith.constant 1 : index
    %c0_8 = arith.constant 0 : index
    %9 = vector.load %arg5[%c1, %c0_8] : memref<3x128xf32, #tpu.memory_space<vmem>>, vector<1x128xf32>
    %10 = vector.broadcast %9 : vector<1x128xf32> to vector<8x128xf32>
    %11 = arith.addf %8, %10 : vector<8x128xf32>
    %12 = math.tanh %11 : vector<8x128xf32>
    %c0_9 = arith.constant 0 : index
    %c0_10 = arith.constant 0 : index
    %13 = vector.load %arg4[%c0_9, %c0_10] : memref<128x128xf32, #tpu.memory_space<vmem>>, vector<128x128xf32>
    %cst_11 = arith.constant dense<0.000000e+00> : vector<8x128xf32>
    %14 = tpu.matmul %12, %13, %cst_11 {dimension_numbers = #tpu.dot_dimension_numbers<[1], [0], [0], [1], [0, 0, 1, 1], [], []>, precision = #tpu.contract_precision<fp32>} : vector<8x128xf32>, vector<128x128xf32>, vector<8x128xf32> -> vector<8x128xf32>
    %c2 = arith.constant 2 : index
    %c0_12 = arith.constant 0 : index
    %15 = vector.load %arg5[%c2, %c0_12] : memref<3x128xf32, #tpu.memory_space<vmem>>, vector<1x128xf32>
    %16 = vector.broadcast %15 : vector<1x128xf32> to vector<8x128xf32>
    %17 = arith.addf %14, %16 : vector<8x128xf32>
    %18 = tpu.iota {dimensions = array<i32: 1>} : vector<8x128xi32>
    %c1_i32 = arith.constant 1 : i32
    %19 = vector.broadcast %c1_i32 : i32 to vector<8x128xi32>
    %20 = arith.cmpi sge, %18, %19 : vector<8x128xi32>
    %c8_i32 = arith.constant 8 : i32
    %21 = vector.broadcast %c8_i32 : i32 to vector<8x128xi32>
    %22 = arith.cmpi sle, %18, %21 : vector<8x128xi32>
    %23 = arith.andi %20, %22 : vector<8x128xi1>
    %cst_13 = arith.constant -1.000000e+30 : f32
    %24 = vector.broadcast %cst_13 : f32 to vector<8x128xf32>
    %25 = arith.select %23, %17, %24 : vector<8x128xi1>, vector<8x128xf32>
    %cst_14 = arith.constant dense<0xFF800000> : vector<8xf32>
    %26 = vector.multi_reduction <maximumf>, %25, %cst_14 [1] : vector<8x128xf32> to vector<8xf32>
    %27 = vector.shape_cast %26 : vector<8xf32> to vector<8x1xf32>
    %28 = vector.broadcast %27 : vector<8x1xf32> to vector<8x128xf32>
    %29 = arith.subf %25, %28 : vector<8x128xf32>
    %30 = math.exp %29 : vector<8x128xf32>
    %cst_15 = arith.constant 0.000000e+00 : f32
    %31 = vector.broadcast %cst_15 : f32 to vector<8x128xf32>
    %32 = arith.select %23, %30, %31 : vector<8x128xi1>, vector<8x128xf32>
    %cst_16 = arith.constant dense<0.000000e+00> : vector<8xf32>
    %33 = vector.multi_reduction <add>, %32, %cst_16 [1] : vector<8x128xf32> to vector<8xf32>
    %34 = vector.shape_cast %33 : vector<8xf32> to vector<8x1xf32>
    %35 = math.log %34 : vector<8x1xf32>
    %36 = vector.broadcast %27 : vector<8x1xf32> to vector<8x128xf32>
    %37 = arith.cmpf oeq, %25, %36 : vector<8x128xf32>
    %38 = arith.andi %23, %37 : vector<8x128xi1>
    %c9_i32 = arith.constant 9 : i32
    %39 = vector.broadcast %c9_i32 : i32 to vector<8x128xi32>
    %40 = arith.select %38, %18, %39 : vector<8x128xi1>, vector<8x128xi32>
    %cst_17 = arith.constant dense<2147483647> : vector<8xi32>
    %41 = vector.multi_reduction <minsi>, %40, %cst_17 [1] : vector<8x128xi32> to vector<8xi32>
    %42 = vector.shape_cast %41 : vector<8xi32> to vector<8x1xi32>
    %43 = vector.broadcast %42 : vector<8x1xi32> to vector<8x128xi32>
    %44 = arith.cmpi eq, %18, %43 : vector<8x128xi32>
    %45 = vector.broadcast %35 : vector<8x1xf32> to vector<8x128xf32>
    %46 = arith.subf %29, %45 : vector<8x128xf32>
    %cst_18 = arith.constant 0.000000e+00 : f32
    %47 = vector.broadcast %cst_18 : f32 to vector<8x128xf32>
    %48 = arith.select %44, %46, %47 : vector<8x128xi1>, vector<8x128xf32>
    %cst_19 = arith.constant dense<0.000000e+00> : vector<8xf32>
    %49 = vector.multi_reduction <add>, %48, %cst_19 [1] : vector<8x128xf32> to vector<8xf32>
    %50 = vector.shape_cast %49 : vector<8xf32> to vector<8x1xf32>
    %51 = vector.extract_strided_slice %17 {offsets = [0, 0], sizes = [8, 1], strides = [1, 1]} : vector<8x128xf32> to vector<8x1xf32>
    %c1_i32_20 = arith.constant 1 : i32
    %52 = vector.broadcast %c1_i32_20 : i32 to vector<8x1xi32>
    %53 = arith.subi %42, %52 : vector<8x1xi32>
    %54 = arith.sitofp %53 : vector<8x1xi32> to vector<8x1xf32>
    %55 = tpu.iota {dimensions = array<i32: 1>} : vector<8x3xi32>
    %c0_i32 = arith.constant 0 : i32
    %56 = vector.broadcast %c0_i32 : i32 to vector<8x3xi32>
    %57 = arith.cmpi eq, %55, %56 : vector<8x3xi32>
    %cst_21 = arith.constant 0.000000e+00 : f32
    %58 = vector.shape_cast %51 : vector<8x1xf32> to vector<8x1xf32>
    %59 = vector.broadcast %58 : vector<8x1xf32> to vector<8x3xf32>
    %60 = vector.broadcast %cst_21 : f32 to vector<8x3xf32>
    %61 = arith.select %57, %59, %60 : vector<8x3xi1>, vector<8x3xf32>
    %c1_i32_22 = arith.constant 1 : i32
    %62 = vector.broadcast %c1_i32_22 : i32 to vector<8x3xi32>
    %63 = arith.cmpi eq, %55, %62 : vector<8x3xi32>
    %64 = vector.shape_cast %50 : vector<8x1xf32> to vector<8x1xf32>
    %65 = vector.broadcast %64 : vector<8x1xf32> to vector<8x3xf32>
    %66 = arith.select %63, %65, %61 : vector<8x3xi1>, vector<8x3xf32>
    %c2_i32 = arith.constant 2 : i32
    %67 = vector.broadcast %c2_i32 : i32 to vector<8x3xi32>
    %68 = arith.cmpi eq, %55, %67 : vector<8x3xi32>
    %69 = vector.shape_cast %54 : vector<8x1xf32> to vector<8x1xf32>
    %70 = vector.broadcast %69 : vector<8x1xf32> to vector<8x3xf32>
    %71 = arith.select %68, %70, %66 : vector<8x3xi1>, vector<8x3xf32>
    %c0_23 = arith.constant 0 : index
    %c0_24 = arith.constant 0 : index
    %72 = vector.load %arg6[%c0_23, %c0_24] : memref<8x3xf32, #tpu.memory_space<vmem>>, vector<8x3xf32>
    tpu.vector_store %arg6[%c0_23, %c0_24], %71 {strides = array<i32>} : memref<8x3xf32, #tpu.memory_space<vmem>>, vector<8x3xf32>,
    return
  }
  func.func @transform_0(%arg0: i32) -> (i32, i32) {
    %c0_i32 = arith.constant 0 : i32
    %c0_i32_0 = arith.constant 0 : i32
    return %arg0, %c0_i32 : i32, i32
  }
  func.func @transform_1(%arg0: i32) -> (i32, i32) {
    %c0_i32 = arith.constant 0 : i32
    %c0_i32_0 = arith.constant 0 : i32
    %c0_i32_1 = arith.constant 0 : i32
    return %c0_i32, %c0_i32_0 : i32, i32
  }
  func.func @transform_2(%arg0: i32) -> (i32, i32) {
    %c0_i32 = arith.constant 0 : i32
    %c0_i32_0 = arith.constant 0 : i32
    %c0_i32_1 = arith.constant 0 : i32
    return %c0_i32, %c0_i32_0 : i32, i32
  }
  func.func @transform_3(%arg0: i32) -> (i32, i32) {
    %c0_i32 = arith.constant 0 : i32
    %c0_i32_0 = arith.constant 0 : i32
    %c0_i32_1 = arith.constant 0 : i32
    return %c0_i32, %c0_i32_0 : i32, i32
  }
  func.func @transform_4(%arg0: i32) -> (i32, i32) {
    %c0_i32 = arith.constant 0 : i32
    %c0_i32_0 = arith.constant 0 : i32
    %c0_i32_1 = arith.constant 0 : i32
    return %c0_i32, %c0_i32_0 : i32, i32
  }
  func.func @transform_5(%arg0: i32) -> (i32, i32) {
    %c0_i32 = arith.constant 0 : i32
    %c0_i32_0 = arith.constant 0 : i32
    return %arg0, %c0_i32 : i32, i32
  }
}

</mosaic_0001>

<llo_original>
// kernel: agent_act.1
$region0: #{agent_act.1}
  #allocation0 [shape = 'u32[]', space=smem, size = 0x4, offset = 0x4, fixed_abs, tag = 'smem constant byte address 0x4 - core index']
  #allocation1 [shape = 'u32[72,128]{1,0:T(1,128)}', space=vmem, size = 0x9000, scoped, tag = 'internal scratch']
  %s0 = inlined_call_operand.hbm [shape: f32[8,32], index: 0, kind: input, shape index: {}]
  %s1 = inlined_call_operand.hbm [shape: f32[32,128], index: 1, kind: input, shape index: {}]
  %s2 = inlined_call_operand.hbm [shape: f32[128,128], index: 2, kind: input, shape index: {}]
  %s3 = inlined_call_operand.hbm [shape: f32[128,128], index: 3, kind: input, shape index: {}]
  %s4 = inlined_call_operand.vmem [shape: f32[3,128], index: 4, kind: input, shape index: {}]
  %s5 = inlined_call_operand.vmem [shape: f32[8,3], index: 5, kind: output, shape index: {}]
  %s6 = sld [smem:[#allocation0]]
  $region46: #{agent_act.1} parent=0
    _
  %s8 = ssub.s32 1, %s6
  %s9 = scalar_select 0, %s8, %s6
  $region1: #{agent_act.1} parent=0
    #allocation2 [shape = 'u8[4096]{0}', space=vmem, size = 0x1000, scoped, tag = 'input window, operand 0, single buffered']
    #allocation3 [shape = 's32[1]{0}', space=sflag, size = 0x4, scoped, tag = 'scoped memory for agent_act.1']
    #allocation4 [shape = 'u8[16384]{0}', space=vmem, size = 0x4000, scoped, tag = 'input window, operand 1, single buffered']
    #allocation5 [shape = 's32[1]{0}', space=sflag, size = 0x4, scoped, tag = 'scoped memory for agent_act.1']
    #allocation6 [shape = 'u8[65536]{0}', space=vmem, size = 0x10000, scoped, tag = 'input window, operand 2, single buffered']
    #allocation7 [shape = 'u8[65536]{0}', space=vmem, size = 0x10000, scoped, tag = 'input window, operand 3, single buffered']
    #allocation8 [shape = 's32[1]{0}', space=sflag, size = 0x4, scoped, tag = 'scoped memory for agent_act.1']
    %10 = vsyncpa [#allocation3], 0
    %11 = vsyncpa [#allocation5], 0
    %12 = vsyncpa [#allocation8], 0
    // Predicated region
    $region2: #{agent_act.1} parent=1 // pred_check
      _
    $region3: #{agent_act.1} parent=1 // pred_check_branch
      %14 = sbr.rel (0) target = $region5
    $region4: #{agent_act.1} parent=1 // pred_region
      %16 = vsyncadd [#allocation3], 0
      %s18 = sshll.u32 %s0, 4
      %s19 = int_to_ptr.hbm [resolvable:$true] %s18
      %s20 = sshll.u32 [#allocation2], 4
      %s21 = int_to_ptr.vmem [resolvable:$true] %s20
      %23 = dma.hbm_to_vmem [thread:$0]  %s19, 128, %s21, [#allocation3]
    $region5: #{agent_act.1} parent=1 // pred_fallthru
      _
    // Predicated region
    $region6: #{agent_act.1} parent=1 // pred_check
      _
    $region7: #{agent_act.1} parent=1 // pred_check_branch
      %25 = sbr.rel (0) target = $region9
    $region8: #{agent_act.1} parent=1 // pred_region
      %27 = vsyncadd [#allocation5], 0
      %s28 = sshll.u32 %s1, 4
      %s29 = int_to_ptr.hbm [resolvable:$true] %s28
      %s30 = sshll.u32 [#allocation4], 4
      %s31 = int_to_ptr.vmem [resolvable:$true] %s30
      %36 = dma.hbm_to_vmem [thread:$0]  %s29, 512, %s31, [#allocation5], 128, 128, 8
    $region9: #{agent_act.1} parent=1 // pred_fallthru
      _
    // Predicated region
    $region10: #{agent_act.1} parent=1 // pred_check
      _
    $region11: #{agent_act.1} parent=1 // pred_check_branch
      %38 = sbr.rel (0) target = $region13
    $region12: #{agent_act.1} parent=1 // pred_region
      %40 = vsyncadd [#allocation5], 0
      %s41 = sshll.u32 %s2, 4
      %s42 = int_to_ptr.hbm [resolvable:$true] %s41
      %s43 = sshll.u32 [#allocation6], 4
      %s44 = int_to_ptr.vmem [resolvable:$true] %s43
      %49 = dma.hbm_to_vmem [thread:$0]  %s42, 2048, %s44, [#allocation5], 128, 128, 8
    $region13: #{agent_act.1} parent=1 // pred_fallthru
      _
    // Predicated region
    $region14: #{agent_act.1} parent=1 // pred_check
      _
    $region15: #{agent_act.1} parent=1 // pred_check_branch
      %51 = sbr.rel (0) target = $region17
    $region16: #{agent_act.1} parent=1 // pred_region
      %53 = vsyncadd [#allocation8], 0
      %s54 = sshll.u32 %s3, 4
      %s55 = int_to_ptr.hbm [resolvable:$true] %s54
      %s56 = sshll.u32 [#allocation7], 4
      %s57 = int_to_ptr.vmem [resolvable:$true] %s56
      %62 = dma.hbm_to_vmem [thread:$0]  %s55, 2048, %s57, [#allocation8], 128, 128, 8
    $region17: #{agent_act.1} parent=1 // pred_fallthru
      _
    // Predicated region
    $region18: #{agent_act.1} parent=1 // pred_check
      _
    $region19: #{agent_act.1} parent=1 // pred_check_branch
      %64 = sbr.rel (0) target = $region21
    $region20: #{agent_act.1} parent=1 // pred_region
      _
    $region21: #{agent_act.1} parent=1 // pred_fallthru
      _
    // Predicated region
    $region22: #{agent_act.1} parent=1 // pred_check
      _
    $region23: #{agent_act.1} parent=1 // pred_check_branch
      %66 = sbr.rel (0) target = $region25
    $region24: #{agent_act.1} parent=1 // pred_region
      %68 = dma.done [#allocation3], 128
    $region25: #{agent_act.1} parent=1 // pred_fallthru
      _
    // Predicated region
    $region26: #{agent_act.1} parent=1 // pred_check
      _
    $region27: #{agent_act.1} parent=1 // pred_check_branch
      %70 = sbr.rel (0) target = $region29
    $region28: #{agent_act.1} parent=1 // pred_region
      %72 = dma.done [#allocation5], 512
    $region29: #{agent_act.1} parent=1 // pred_fallthru
      _
    // Predicated region
    $region30: #{agent_act.1} parent=1 // pred_check
      _
    $region31: #{agent_act.1} parent=1 // pred_check_branch
      %74 = sbr.rel (0) target = $region33
    $region32: #{agent_act.1} parent=1 // pred_region
      %76 = dma.done [#allocation5], 2048
    $region33: #{agent_act.1} parent=1 // pred_fallthru
      _
    // Predicated region
    $region34: #{agent_act.1} parent=1 // pred_check
      _
    $region35: #{agent_act.1} parent=1 // pred_check_branch
      %78 = sbr.rel (0) target = $region37
    $region36: #{agent_act.1} parent=1 // pred_region
      %80 = dma.done [#allocation8], 2048
    $region37: #{agent_act.1} parent=1 // pred_fallthru
      _
    %v81 = vld [vmem:[#allocation2] sm:$0xff]
    %v82 = vld [vmem:[#allocation4] sm:$0xff]
    %v83 = vld [vmem:[#allocation4 + $0x8] sm:$0xff]
    %v84 = vld [vmem:[#allocation4 + $0x10] sm:$0xff]
    %v85 = vld [vmem:[#allocation4 + $0x18] sm:$0xff]
    %v86 = vld [vmem:[%s4] sm:$0x1]
    %v87 = vperm.slane %v86, 0
    %vm88 = vcmask 261120
    %v90 = vsel %vm88, %v81, 0
    %92 = vmatpush.msra.mxu0 0.0
    %93 = vmatpush.msra.mxu0 0.0
    %94 = vmatpush.msra.mxu0 0.0
    %95 = vmatpush.msra.mxu0 0.0
    %96 = vmatpush.msra.mxu0 0.0
    %97 = vmatpush.msra.mxu0 0.0
    %98 = vmatpush.msra.mxu0 0.0
    %99 = vmatpush.msra.mxu0 0.0
    %100 = vmatpush.msra.mxu0 0.0
    %101 = vmatpush.msra.mxu0 0.0
    %102 = vmatpush.msra.mxu0 0.0
    %103 = vmatpush.msra.mxu0 0.0
    %v104 = vand.u32 %v85, 4294901760
    %105 = vmatpush.msra.mxu0 %v104
    %v106 = vand.u32 %v84, 4294901760
    %107 = vmatpush.msra.mxu0 %v106
    %v108 = vand.u32 %v83, 4294901760
    %109 = vmatpush.msra.mxu0 %v108
    %v110 = vand.u32 %v82, 4294901760
    %111 = vmatpush.msra.mxu0 %v110
    %v112 = vand.u32 %v90, 4294901760
    %v113 = vsub.f32 %v90, %v112
    %v114 = vand.u32 %v113, 4294901760
    %v115 = vsub.f32 %v113, %v114
    %v116 = vand.u32 %v115, 4294901760
    %117 = vmatmul.f32.gmra.mxu0 %v116
    %v118 = vpop.f32.mrf.mxu0
    %v119 = vadd.f32 %v87, %v118
    %120 = vdwg.mxu0
    %121 = vmatpush.msra.mxu0 0.0
    %122 = vmatpush.msra.mxu0 0.0
    %123 = vmatpush.msra.mxu0 0.0
    %124 = vmatpush.msra.mxu0 0.0
    %125 = vmatpush.msra.mxu0 0.0
    %126 = vmatpush.msra.mxu0 0.0
    %127 = vmatpush.msra.mxu0 0.0
    %128 = vmatpush.msra.mxu0 0.0
    %129 = vmatpush.msra.mxu0 0.0
    %130 = vmatpush.msra.mxu0 0.0
    %131 = vmatpush.msra.mxu0 0.0
    %132 = vmatpush.msra.mxu0 0.0
    %v133 = vand.u32 %v85, 4294901760
    %v134 = vsub.f32 %v85, %v133
    %v135 = vand.u32 %v134, 4294901760
    %v136 = vsub.f32 %v134, %v135
    %v137 = vand.u32 %v136, 4294901760
    %138 = vmatpush.msra.mxu0 %v137
    %v139 = vand.u32 %v84, 4294901760
    %v140 = vsub.f32 %v84, %v139
    %v141 = vand.u32 %v140, 4294901760
    %v142 = vsub.f32 %v140, %v141
    %v143 = vand.u32 %v142, 4294901760
    %144 = vmatpush.msra.mxu0 %v143
    %v145 = vand.u32 %v83, 4294901760
    %v146 = vsub.f32 %v83, %v145
    %v147 = vand.u32 %v146, 4294901760
    %v148 = vsub.f32 %v146, %v147
    %v149 = vand.u32 %v148, 4294901760
    %150 = vmatpush.msra.mxu0 %v149
    %v151 = vand.u32 %v82, 4294901760
    %v152 = vsub.f32 %v82, %v151
    %v153 = vand.u32 %v152, 4294901760
    %v154 = vsub.f32 %v152, %v153
    %v155 = vand.u32 %v154, 4294901760
    %156 = vmatpush.msra.mxu0 %v155
    %v157 = vand.u32 %v90, 4294901760
    %158 = vmatmul.f32.gmra.mxu0 %v157
    %v159 = vpop.f32.mrf.mxu0
    %v160 = vadd.f32 %v119, %v159
    %161 = vdwg.mxu0
    %162 = vmatpush.msra.mxu0 0.0
    %163 = vmatpush.msra.mxu0 0.0
    %164 = vmatpush.msra.mxu0 0.0
    %165 = vmatpush.msra.mxu0 0.0
    %166 = vmatpush.msra.mxu0 0.0
    %167 = vmatpush.msra.mxu0 0.0
    %168 = vmatpush.msra.mxu0 0.0
    %169 = vmatpush.msra.mxu0 0.0
    %170 = vmatpush.msra.mxu0 0.0
    %171 = vmatpush.msra.mxu0 0.0
    %172 = vmatpush.msra.mxu0 0.0
    %173 = vmatpush.msra.mxu0 0.0
    %v174 = vand.u32 %v85, 4294901760
    %v175 = vsub.f32 %v85, %v174
    %176 = vmatpush.msra.mxu0 %v175
    %v177 = vand.u32 %v84, 4294901760
    %v178 = vsub.f32 %v84, %v177
    %179 = vmatpush.msra.mxu0 %v178
    %v180 = vand.u32 %v83, 4294901760
    %v181 = vsub.f32 %v83, %v180
    %182 = vmatpush.msra.mxu0 %v181
    %v183 = vand.u32 %v82, 4294901760
    %v184 = vsub.f32 %v82, %v183
    %185 = vmatpush.msra.mxu0 %v184
    %v186 = vand.u32 %v90, 4294901760
    %v187 = vsub.f32 %v90, %v186
    %188 = vmatmul.f32.gmra.mxu0 %v187
    %v189 = vpop.f32.mrf.mxu0
    %v190 = vadd.f32 %v160, %v189
    %191 = vdwg.mxu0
    %192 = vmatpush.msra.mxu0 0.0
    %193 = vmatpush.msra.mxu0 0.0
    %194 = vmatpush.msra.mxu0 0.0
    %195 = vmatpush.msra.mxu0 0.0
    %196 = vmatpush.msra.mxu0 0.0
    %197 = vmatpush.msra.mxu0 0.0
    %198 = vmatpush.msra.mxu0 0.0
    %199 = vmatpush.msra.mxu0 0.0
    %200 = vmatpush.msra.mxu0 0.0
    %201 = vmatpush.msra.mxu0 0.0
    %202 = vmatpush.msra.mxu0 0.0
    %203 = vmatpush.msra.mxu0 0.0
    %v204 = vand.u32 %v85, 4294901760
    %205 = vmatpush.msra.mxu0 %v204
    %v206 = vand.u32 %v84, 4294901760
    %207 = vmatpush.msra.mxu0 %v206
    %v208 = vand.u32 %v83, 4294901760
    %209 = vmatpush.msra.mxu0 %v208
    %v210 = vand.u32 %v82, 4294901760
    %211 = vmatpush.msra.mxu0 %v210
    %v212 = vand.u32 %v90, 4294901760
    %v213 = vsub.f32 %v90, %v212
    %v214 = vand.u32 %v213, 4294901760
    %215 = vmatmul.f32.gmra.mxu0 %v214
    %v216 = vpop.f32.mrf.mxu0
    %v217 = vadd.f32 %v190, %v216
    %218 = vdwg.mxu0
    %219 = vmatpush.msra.mxu0 0.0
    %220 = vmatpush.msra.mxu0 0.0
    %221 = vmatpush.msra.mxu0 0.0
    %222 = vmatpush.msra.mxu0 0.0
    %223 = vmatpush.msra.mxu0 0.0
    %224 = vmatpush.msra.mxu0 0.0
    %225 = vmatpush.msra.mxu0 0.0
    %226 = vmatpush.msra.mxu0 0.0
    %227 = vmatpush.msra.mxu0 0.0
    %228 = vmatpush.msra.mxu0 0.0
    %229 = vmatpush.msra.mxu0 0.0
    %230 = vmatpush.msra.mxu0 0.0
    %v231 = vand.u32 %v85, 4294901760
    %v232 = vsub.f32 %v85, %v231
    %v233 = vand.u32 %v232, 4294901760
    %234 = vmatpush.msra.mxu0 %v233
    %v235 = vand.u32 %v84, 4294901760
    %v236 = vsub.f32 %v84, %v235
    %v237 = vand.u32 %v236, 4294901760
    %238 = vmatpush.msra.mxu0 %v237
    %v239 = vand.u32 %v83, 4294901760
    %v240 = vsub.f32 %v83, %v239
    %v241 = vand.u32 %v240, 4294901760
    %242 = vmatpush.msra.mxu0 %v241
    %v243 = vand.u32 %v82, 4294901760
    %v244 = vsub.f32 %v82, %v243
    %v245 = vand.u32 %v244, 4294901760
    %246 = vmatpush.msra.mxu0 %v245
    %v247 = vand.u32 %v90, 4294901760
    %248 = vmatmul.f32.gmra.mxu0 %v247
    %v249 = vpop.f32.mrf.mxu0
    %v250 = vadd.f32 %v217, %v249
    %251 = vdwg.mxu0
    %252 = vmatpush.msra.mxu0 0.0
    %253 = vmatpush.msra.mxu0 0.0
    %254 = vmatpush.msra.mxu0 0.0
    %255 = vmatpush.msra.mxu0 0.0
    %256 = vmatpush.msra.mxu0 0.0
    %257 = vmatpush.msra.mxu0 0.0
    %258 = vmatpush.msra.mxu0 0.0
    %259 = vmatpush.msra.mxu0 0.0
    %260 = vmatpush.msra.mxu0 0.0
    %261 = vmatpush.msra.mxu0 0.0
    %262 = vmatpush.msra.mxu0 0.0
    %263 = vmatpush.msra.mxu0 0.0
    %v264 = vand.u32 %v85, 4294901760
    %265 = vmatpush.msra.mxu0 %v264
    %v266 = vand.u32 %v84, 4294901760
    %267 = vmatpush.msra.mxu0 %v266
    %v268 = vand.u32 %v83, 4294901760
    %269 = vmatpush.msra.mxu0 %v268
    %v270 = vand.u32 %v82, 4294901760
    %271 = vmatpush.msra.mxu0 %v270
    %v272 = vand.u32 %v90, 4294901760
    %273 = vmatmul.f32.gmra.mxu0 %v272
    %v274 = vpop.f32.mrf.mxu0
    %v275 = vadd.f32 %v250, %v274
    %276 = vdwg.mxu0
    %v277 = vtanh.pop %v275
    %v278 = vld [vmem:[#allocation6] sm:$0xff]
    %v279 = vld [vmem:[#allocation6 + $0x8] sm:$0xff]
    %v280 = vld [vmem:[#allocation6 + $0x10] sm:$0xff]
    %v281 = vld [vmem:[#allocation6 + $0x18] sm:$0xff]
    %v282 = vld [vmem:[#allocation6 + $0x20] sm:$0xff]
    %v283 = vld [vmem:[#allocation6 + $0x28] sm:$0xff]
    %v284 = vld [vmem:[#allocation6 + $0x30] sm:$0xff]
    %v285 = vld [vmem:[#allocation6 + $0x38] sm:$0xff]
    %v286 = vld [vmem:[#allocation6 + $0x40] sm:$0xff]
    %v287 = vld [vmem:[#allocation6 + $0x48] sm:$0xff]
    %v288 = vld [vmem:[#allocation6 + $0x50] sm:$0xff]
    %v289 = vld [vmem:[#allocation6 + $0x58] sm:$0xff]
    %v290 = vld [vmem:[#allocation6 + $0x60] sm:$0xff]
    %v291 = vld [vmem:[#allocation6 + $0x68] sm:$0xff]
    %v292 = vld [vmem:[#allocation6 + $0x70] sm:$0xff]
    %v293 = vld [vmem:[#allocation6 + $0x78] sm:$0xff]
    %v294 = vld [vmem:[%s4 + $0x1] sm:$0x1]
    %v295 = vperm.slane %v294, 0
    %v296 = vand.u32 %v293, 4294901760
    %297 = vmatpush.msra.mxu0 %v296
    %v298 = vand.u32 %v292, 4294901760
    %299 = vmatpush.msra.mxu0 %v298
    %v300 = vand.u32 %v291, 4294901760
    %301 = vmatpush.msra.mxu0 %v300
    %v302 = vand.u32 %v290, 4294901760
    %303 = vmatpush.msra.mxu0 %v302
    %v304 = vand.u32 %v289, 4294901760
    %305 = vmatpush.msra.mxu0 %v304
    %v306 = vand.u32 %v288, 4294901760
    %307 = vmatpush.msra.mxu0 %v306
    %v308 = vand.u32 %v287, 4294901760
    %309 = vmatpush.msra.mxu0 %v308
    %v310 = vand.u32 %v286, 4294901760
    %311 = vmatpush.msra.mxu0 %v310
    %v312 = vand.u32 %v285, 4294901760
    %313 = vmatpush.msra.mxu0 %v312
    %v314 = vand.u32 %v284, 4294901760
    %315 = vmatpush.msra.mxu0 %v314
    %v316 = vand.u32 %v283, 4294901760
    %317 = vmatpush.msra.mxu0 %v316
    %v318 = vand.u32 %v282, 4294901760
    %319 = vmatpush.msra.mxu0 %v318
    %v320 = vand.u32 %v281, 4294901760
    %321 = vmatpush.msra.mxu0 %v320
    %v322 = vand.u32 %v280, 4294901760
    %323 = vmatpush.msra.mxu0 %v322
    %v324 = vand.u32 %v279, 4294901760
    %325 = vmatpush.msra.mxu0 %v324
    %v326 = vand.u32 %v278, 4294901760
    %327 = vmatpush.msra.mxu0 %v326
    %v328 = vand.u32 %v277, 4294901760
    %v329 = vsub.f32 %v277, %v328
    %v330 = vand.u32 %v329, 4294901760
    %v331 = vsub.f32 %v329, %v330
    %v332 = vand.u32 %v331, 4294901760
    %333 = vmatmul.f32.gmra.mxu0 %v332
    %v334 = vpop.f32.mrf.mxu0
    %v335 = vadd.f32 %v295, %v334
    %336 = vdwg.mxu0
    %v337 = vand.u32 %v293, 4294901760
    %v338 = vsub.f32 %v293, %v337
    %v339 = vand.u32 %v338, 4294901760
    %v340 = vsub.f32 %v338, %v339
    %v341 = vand.u32 %v340, 4294901760
    %342 = vmatpush.msra.mxu0 %v341
    %v343 = vand.u32 %v292, 4294901760
    %v344 = vsub.f32 %v292, %v343
    %v345 = vand.u32 %v344, 4294901760
    %v346 = vsub.f32 %v344, %v345
    %v347 = vand.u32 %v346, 4294901760
    %348 = vmatpush.msra.mxu0 %v347
    %v349 = vand.u32 %v291, 4294901760
    %v350 = vsub.f32 %v291, %v349
    %v351 = vand.u32 %v350, 4294901760
    %v352 = vsub.f32 %v350, %v351
    %v353 = vand.u32 %v352, 4294901760
    %354 = vmatpush.msra.mxu0 %v353
    %v355 = vand.u32 %v290, 4294901760
    %v356 = vsub.f32 %v290, %v355
    %v357 = vand.u32 %v356, 4294901760
    %v358 = vsub.f32 %v356, %v357
    %v359 = vand.u32 %v358, 4294901760
    %360 = vmatpush.msra.mxu0 %v359
    %v361 = vand.u32 %v289, 4294901760
    %v362 = vsub.f32 %v289, %v361
    %v363 = vand.u32 %v362, 4294901760
    %v364 = vsub.f32 %v362, %v363
    %v365 = vand.u32 %v364, 4294901760
    %366 = vmatpush.msra.mxu0 %v365
    %v367 = vand.u32 %v288, 4294901760
    %v368 = vsub.f32 %v288, %v367
    %v369 = vand.u32 %v368, 4294901760
    %v370 = vsub.f32 %v368, %v369
    %v371 = vand.u32 %v370, 4294901760
    %372 = vmatpush.msra.mxu0 %v371
    %v373 = vand.u32 %v287, 4294901760
    %v374 = vsub.f32 %v287, %v373
    %v375 = vand.u32 %v374, 4294901760
    %v376 = vsub.f32 %v374, %v375
    %v377 = vand.u32 %v376, 4294901760
    %378 = vmatpush.msra.mxu0 %v377
    %v379 = vand.u32 %v286, 4294901760
    %v380 = vsub.f32 %v286, %v379
    %v381 = vand.u32 %v380, 4294901760
    %v382 = vsub.f32 %v380, %v381
    %v383 = vand.u32 %v382, 4294901760
    %384 = vmatpush.msra.mxu0 %v383
    %v385 = vand.u32 %v285, 4294901760
    %v386 = vsub.f32 %v285, %v385
    %v387 = vand.u32 %v386, 4294901760
    %v388 = vsub.f32 %v386, %v387
    %v389 = vand.u32 %v388, 4294901760
    %390 = vmatpush.msra.mxu0 %v389
    %v391 = vand.u32 %v284, 4294901760
    %v392 = vsub.f32 %v284, %v391
    %v393 = vand.u32 %v392, 4294901760
    %v394 = vsub.f32 %v392, %v393
    %v395 = vand.u32 %v394, 4294901760
    %396 = vmatpush.msra.mxu0 %v395
    %v397 = vand.u32 %v283, 4294901760
    %v398 = vsub.f32 %v283, %v397
    %v399 = vand.u32 %v398, 4294901760
    %v400 = vsub.f32 %v398, %v399
    %v401 = vand.u32 %v400, 4294901760
    %402 = vmatpush.msra.mxu0 %v401
    %v403 = vand.u32 %v282, 4294901760
    %v404 = vsub.f32 %v282, %v403
    %v405 = vand.u32 %v404, 4294901760
    %v406 = vsub.f32 %v404, %v405
    %v407 = vand.u32 %v406, 4294901760
    %408 = vmatpush.msra.mxu0 %v407
    %v409 = vand.u32 %v281, 4294901760
    %v410 = vsub.f32 %v281, %v409
    %v411 = vand.u32 %v410, 4294901760
    %v412 = vsub.f32 %v410, %v411
    %v413 = vand.u32 %v412, 4294901760
    %414 = vmatpush.msra.mxu0 %v413
    %v415 = vand.u32 %v280, 4294901760
    %v416 = vsub.f32 %v280, %v415
    %v417 = vand.u32 %v416, 4294901760
    %v418 = vsub.f32 %v416, %v417
    %v419 = vand.u32 %v418, 4294901760
    %420 = vmatpush.msra.mxu0 %v419
    %v421 = vand.u32 %v279, 4294901760
    %v422 = vsub.f32 %v279, %v421
    %v423 = vand.u32 %v422, 4294901760
    %v424 = vsub.f32 %v422, %v423
    %v425 = vand.u32 %v424, 4294901760
    %426 = vmatpush.msra.mxu0 %v425
    %v427 = vand.u32 %v278, 4294901760
    %v428 = vsub.f32 %v278, %v427
    %v429 = vand.u32 %v428, 4294901760
    %v430 = vsub.f32 %v428, %v429
    %v431 = vand.u32 %v430, 4294901760
    %432 = vmatpush.msra.mxu0 %v431
    %v433 = vand.u32 %v277, 4294901760
    %434 = vmatmul.f32.gmra.mxu0 %v433
    %v435 = vpop.f32.mrf.mxu0
    %v436 = vadd.f32 %v335, %v435
    %437 = vdwg.mxu0
    %v438 = vand.u32 %v293, 4294901760
    %v439 = vsub.f32 %v293, %v438
    %440 = vmatpush.msra.mxu0 %v439
    %v441 = vand.u32 %v292, 4294901760
    %v442 = vsub.f32 %v292, %v441
    %443 = vmatpush.msra.mxu0 %v442
    %v444 = vand.u32 %v291, 4294901760
    %v445 = vsub.f32 %v291, %v444
    %446 = vmatpush.msra.mxu0 %v445
    %v447 = vand.u32 %v290, 4294901760
    %v448 = vsub.f32 %v290, %v447
    %449 = vmatpush.msra.mxu0 %v448
    %v450 = vand.u32 %v289, 4294901760
    %v451 = vsub.f32 %v289, %v450
    %452 = vmatpush.msra.mxu0 %v451
    %v453 = vand.u32 %v288, 4294901760
    %v454 = vsub.f32 %v288, %v453
    %455 = vmatpush.msra.mxu0 %v454
    %v456 = vand.u32 %v287, 4294901760
    %v457 = vsub.f32 %v287, %v456
    %458 = vmatpush.msra.mxu0 %v457
    %v459 = vand.u32 %v286, 4294901760
    %v460 = vsub.f32 %v286, %v459
    %461 = vmatpush.msra.mxu0 %v460
    %v462 = vand.u32 %v285, 4294901760
    %v463 = vsub.f32 %v285, %v462
    %464 = vmatpush.msra.mxu0 %v463
    %v465 = vand.u32 %v284, 4294901760
    %v466 = vsub.f32 %v284, %v465
    %467 = vmatpush.msra.mxu0 %v466
    %v468 = vand.u32 %v283, 4294901760
    %v469 = vsub.f32 %v283, %v468
    %470 = vmatpush.msra.mxu0 %v469
    %v471 = vand.u32 %v282, 4294901760
    %v472 = vsub.f32 %v282, %v471
    %473 = vmatpush.msra.mxu0 %v472
    %v474 = vand.u32 %v281, 4294901760
    %v475 = vsub.f32 %v281, %v474
    %476 = vmatpush.msra.mxu0 %v475
    %v477 = vand.u32 %v280, 4294901760
    %v478 = vsub.f32 %v280, %v477
    %479 = vmatpush.msra.mxu0 %v478
    %v480 = vand.u32 %v279, 4294901760
    %v481 = vsub.f32 %v279, %v480
    %482 = vmatpush.msra.mxu0 %v481
    %v483 = vand.u32 %v278, 4294901760
    %v484 = vsub.f32 %v278, %v483
    %485 = vmatpush.msra.mxu0 %v484
    %v486 = vand.u32 %v277, 4294901760
    %v487 = vsub.f32 %v277, %v486
    %488 = vmatmul.f32.gmra.mxu0 %v487
    %v489 = vpop.f32.mrf.mxu0
    %v490 = vadd.f32 %v436, %v489
    %491 = vdwg.mxu0
    %v492 = vand.u32 %v293, 4294901760
    %493 = vmatpush.msra.mxu0 %v492
    %v494 = vand.u32 %v292, 4294901760
    %495 = vmatpush.msra.mxu0 %v494
    %v496 = vand.u32 %v291, 4294901760
    %497 = vmatpush.msra.mxu0 %v496
    %v498 = vand.u32 %v290, 4294901760
    %499 = vmatpush.msra.mxu0 %v498
    %v500 = vand.u32 %v289, 4294901760
    %501 = vmatpush.msra.mxu0 %v500
    %v502 = vand.u32 %v288, 4294901760
    %503 = vmatpush.msra.mxu0 %v502
    %v504 = vand.u32 %v287, 4294901760
    %505 = vmatpush.msra.mxu0 %v504
    %v506 = vand.u32 %v286, 4294901760
    %507 = vmatpush.msra.mxu0 %v506
    %v508 = vand.u32 %v285, 4294901760
    %509 = vmatpush.msra.mxu0 %v508
    %v510 = vand.u32 %v284, 4294901760
    %511 = vmatpush.msra.mxu0 %v510
    %v512 = vand.u32 %v283, 4294901760
    %513 = vmatpush.msra.mxu0 %v512
    %v514 = vand.u32 %v282, 4294901760
    %515 = vmatpush.msra.mxu0 %v514
    %v516 = vand.u32 %v281, 4294901760
    %517 = vmatpush.msra.mxu0 %v516
    %v518 = vand.u32 %v280, 4294901760
    %519 = vmatpush.msra.mxu0 %v518
    %v520 = vand.u32 %v279, 4294901760
    %521 = vmatpush.msra.mxu0 %v520
    %v522 = vand.u32 %v278, 4294901760
    %523 = vmatpush.msra.mxu0 %v522
    %v524 = vand.u32 %v277, 4294901760
    %v525 = vsub.f32 %v277, %v524
    %v526 = vand.u32 %v525, 4294901760
    %527 = vmatmul.f32.gmra.mxu0 %v526
    %v528 = vpop.f32.mrf.mxu0
    %v529 = vadd.f32 %v490, %v528
    %530 = vdwg.mxu0
    %v531 = vand.u32 %v293, 4294901760
    %v532 = vsub.f32 %v293, %v531
    %v533 = vand.u32 %v532, 4294901760
    %534 = vmatpush.msra.mxu0 %v533
    %v535 = vand.u32 %v292, 4294901760
    %v536 = vsub.f32 %v292, %v535
    %v537 = vand.u32 %v536, 4294901760
    %538 = vmatpush.msra.mxu0 %v537
    %v539 = vand.u32 %v291, 4294901760
    %v540 = vsub.f32 %v291, %v539
    %v541 = vand.u32 %v540, 4294901760
    %542 = vmatpush.msra.mxu0 %v541
    %v543 = vand.u32 %v290, 4294901760
    %v544 = vsub.f32 %v290, %v543
    %v545 = vand.u32 %v544, 4294901760
    %546 = vmatpush.msra.mxu0 %v545
    %v547 = vand.u32 %v289, 4294901760
    %v548 = vsub.f32 %v289, %v547
    %v549 = vand.u32 %v548, 4294901760
    %550 = vmatpush.msra.mxu0 %v549
    %v551 = vand.u32 %v288, 4294901760
    %v552 = vsub.f32 %v288, %v551
    %v553 = vand.u32 %v552, 4294901760
    %554 = vmatpush.msra.mxu0 %v553
    %v555 = vand.u32 %v287, 4294901760
    %v556 = vsub.f32 %v287, %v555
    %v557 = vand.u32 %v556, 4294901760
    %558 = vmatpush.msra.mxu0 %v557
    %v559 = vand.u32 %v286, 4294901760
    %v560 = vsub.f32 %v286, %v559
    %v561 = vand.u32 %v560, 4294901760
    %562 = vmatpush.msra.mxu0 %v561
    %v563 = vand.u32 %v285, 4294901760
    %v564 = vsub.f32 %v285, %v563
    %v565 = vand.u32 %v564, 4294901760
    %566 = vmatpush.msra.mxu0 %v565
    %v567 = vand.u32 %v284, 4294901760
    %v568 = vsub.f32 %v284, %v567
    %v569 = vand.u32 %v568, 4294901760
    %570 = vmatpush.msra.mxu0 %v569
    %v571 = vand.u32 %v283, 4294901760
    %v572 = vsub.f32 %v283, %v571
    %v573 = vand.u32 %v572, 4294901760
    %574 = vmatpush.msra.mxu0 %v573
    %v575 = vand.u32 %v282, 4294901760
    %v576 = vsub.f32 %v282, %v575
    %v577 = vand.u32 %v576, 4294901760
    %578 = vmatpush.msra.mxu0 %v577
    %v579 = vand.u32 %v281, 4294901760
    %v580 = vsub.f32 %v281, %v579
    %v581 = vand.u32 %v580, 4294901760
    %582 = vmatpush.msra.mxu0 %v581
    %v583 = vand.u32 %v280, 4294901760
    %v584 = vsub.f32 %v280, %v583
    %v585 = vand.u32 %v584, 4294901760
    %586 = vmatpush.msra.mxu0 %v585
    %v587 = vand.u32 %v279, 4294901760
    %v588 = vsub.f32 %v279, %v587
    %v589 = vand.u32 %v588, 4294901760
    %590 = vmatpush.msra.mxu0 %v589
    %v591 = vand.u32 %v278, 4294901760
    %v592 = vsub.f32 %v278, %v591
    %v593 = vand.u32 %v592, 4294901760
    %594 = vmatpush.msra.mxu0 %v593
    %v595 = vand.u32 %v277, 4294901760
    %596 = vmatmul.f32.gmra.mxu0 %v595
    %v597 = vpop.f32.mrf.mxu0
    %v598 = vadd.f32 %v529, %v597
    %599 = vdwg.mxu0
    %v600 = vand.u32 %v293, 4294901760
    %601 = vmatpush.msra.mxu0 %v600
    %v602 = vand.u32 %v292, 4294901760
    %603 = vmatpush.msra.mxu0 %v602
    %v604 = vand.u32 %v291, 4294901760
    %605 = vmatpush.msra.mxu0 %v604
    %v606 = vand.u32 %v290, 4294901760
    %607 = vmatpush.msra.mxu0 %v606
    %v608 = vand.u32 %v289, 4294901760
    %609 = vmatpush.msra.mxu0 %v608
    %v610 = vand.u32 %v288, 4294901760
    %611 = vmatpush.msra.mxu0 %v610
    %v612 = vand.u32 %v287, 4294901760
    %613 = vmatpush.msra.mxu0 %v612
    %v614 = vand.u32 %v286, 4294901760
    %615 = vmatpush.msra.mxu0 %v614
    %v616 = vand.u32 %v285, 4294901760
    %617 = vmatpush.msra.mxu0 %v616
    %v618 = vand.u32 %v284, 4294901760
    %619 = vmatpush.msra.mxu0 %v618
    %v620 = vand.u32 %v283, 4294901760
    %621 = vmatpush.msra.mxu0 %v620
    %v622 = vand.u32 %v282, 4294901760
    %623 = vmatpush.msra.mxu0 %v622
    %v624 = vand.u32 %v281, 4294901760
    %625 = vmatpush.msra.mxu0 %v624
    %v626 = vand.u32 %v280, 4294901760
    %627 = vmatpush.msra.mxu0 %v626
    %v628 = vand.u32 %v279, 4294901760
    %629 = vmatpush.msra.mxu0 %v628
    %v630 = vand.u32 %v278, 4294901760
    %631 = vmatpush.msra.mxu0 %v630
    %v632 = vand.u32 %v277, 4294901760
    %633 = vmatmul.f32.gmra.mxu0 %v632
    %v634 = vpop.f32.mrf.mxu0
    %v635 = vadd.f32 %v598, %v634
    %636 = vdwg.mxu0
    %v637 = vtanh.pop %v635
    %v638 = vld [vmem:[#allocation7] sm:$0xff]
    %v639 = vld [vmem:[#allocation7 + $0x8] sm:$0xff]
    %v640 = vld [vmem:[#allocation7 + $0x10] sm:$0xff]
    %v641 = vld [vmem:[#allocation7 + $0x18] sm:$0xff]
    %v642 = vld [vmem:[#allocation7 + $0x20] sm:$0xff]
    %v643 = vld [vmem:[#allocation7 + $0x28] sm:$0xff]
    %v644 = vld [vmem:[#allocation7 + $0x30] sm:$0xff]
    %v645 = vld [vmem:[#allocation7 + $0x38] sm:$0xff]
    %v646 = vld [vmem:[#allocation7 + $0x40] sm:$0xff]
    %v647 = vld [vmem:[#allocation7 + $0x48] sm:$0xff]
    %v648 = vld [vmem:[#allocation7 + $0x50] sm:$0xff]
    %v649 = vld [vmem:[#allocation7 + $0x58] sm:$0xff]
    %v650 = vld [vmem:[#allocation7 + $0x60] sm:$0xff]
    %v651 = vld [vmem:[#allocation7 + $0x68] sm:$0xff]
    %v652 = vld [vmem:[#allocation7 + $0x70] sm:$0xff]
    %v653 = vld [vmem:[#allocation7 + $0x78] sm:$0xff]
    %v654 = vld [vmem:[%s4 + $0x2] sm:$0x1]
    %v655 = vperm.slane %v654, 0
    %v656 = vand.u32 %v653, 4294901760
    %657 = vmatpush.msra.mxu0 %v656
    %v658 = vand.u32 %v652, 4294901760
    %659 = vmatpush.msra.mxu0 %v658
    %v660 = vand.u32 %v651, 4294901760
    %661 = vmatpush.msra.mxu0 %v660
    %v662 = vand.u32 %v650, 4294901760
    %663 = vmatpush.msra.mxu0 %v662
    %v664 = vand.u32 %v649, 4294901760
    %665 = vmatpush.msra.mxu0 %v664
    %v666 = vand.u32 %v648, 4294901760
    %667 = vmatpush.msra.mxu0 %v666
    %v668 = vand.u32 %v647, 4294901760
    %669 = vmatpush.msra.mxu0 %v668
    %v670 = vand.u32 %v646, 4294901760
    %671 = vmatpush.msra.mxu0 %v670
    %v672 = vand.u32 %v645, 4294901760
    %673 = vmatpush.msra.mxu0 %v672
    %v674 = vand.u32 %v644, 4294901760
    %675 = vmatpush.msra.mxu0 %v674
    %v676 = vand.u32 %v643, 4294901760
    %677 = vmatpush.msra.mxu0 %v676
    %v678 = vand.u32 %v642, 4294901760
    %679 = vmatpush.msra.mxu0 %v678
    %v680 = vand.u32 %v641, 4294901760
    %681 = vmatpush.msra.mxu0 %v680
    %v682 = vand.u32 %v640, 4294901760
    %683 = vmatpush.msra.mxu0 %v682
    %v684 = vand.u32 %v639, 4294901760
    %685 = vmatpush.msra.mxu0 %v684
    %v686 = vand.u32 %v638, 4294901760
    %687 = vmatpush.msra.mxu0 %v686
    %v688 = vand.u32 %v637, 4294901760
    %v689 = vsub.f32 %v637, %v688
    %v690 = vand.u32 %v689, 4294901760
    %v691 = vsub.f32 %v689, %v690
    %v692 = vand.u32 %v691, 4294901760
    %693 = vmatmul.f32.gmra.mxu0 %v692
    %v694 = vpop.f32.mrf.mxu0
    %v695 = vadd.f32 %v655, %v694
    %696 = vdwg.mxu0
    %v697 = vand.u32 %v653, 4294901760
    %v698 = vsub.f32 %v653, %v697
    %v699 = vand.u32 %v698, 4294901760
    %v700 = vsub.f32 %v698, %v699
    %v701 = vand.u32 %v700, 4294901760
    %702 = vmatpush.msra.mxu0 %v701
    %v703 = vand.u32 %v652, 4294901760
    %v704 = vsub.f32 %v652, %v703
    %v705 = vand.u32 %v704, 4294901760
    %v706 = vsub.f32 %v704, %v705
    %v707 = vand.u32 %v706, 4294901760
    %708 = vmatpush.msra.mxu0 %v707
    %v709 = vand.u32 %v651, 4294901760
    %v710 = vsub.f32 %v651, %v709
    %v711 = vand.u32 %v710, 4294901760
    %v712 = vsub.f32 %v710, %v711
    %v713 = vand.u32 %v712, 4294901760
    %714 = vmatpush.msra.mxu0 %v713
    %v715 = vand.u32 %v650, 4294901760
    %v716 = vsub.f32 %v650, %v715
    %v717 = vand.u32 %v716, 4294901760
    %v718 = vsub.f32 %v716, %v717
    %v719 = vand.u32 %v718, 4294901760
    %720 = vmatpush.msra.mxu0 %v719
    %v721 = vand.u32 %v649, 4294901760
    %v722 = vsub.f32 %v649, %v721
    %v723 = vand.u32 %v722, 4294901760
    %v724 = vsub.f32 %v722, %v723
    %v725 = vand.u32 %v724, 4294901760
    %726 = vmatpush.msra.mxu0 %v725
    %v727 = vand.u32 %v648, 4294901760
    %v728 = vsub.f32 %v648, %v727
    %v729 = vand.u32 %v728, 4294901760
    %v730 = vsub.f32 %v728, %v729
    %v731 = vand.u32 %v730, 4294901760
    %732 = vmatpush.msra.mxu0 %v731
    %v733 = vand.u32 %v647, 4294901760
    %v734 = vsub.f32 %v647, %v733
    %v735 = vand.u32 %v734, 4294901760
    %v736 = vsub.f32 %v734, %v735
    %v737 = vand.u32 %v736, 4294901760
    %738 = vmatpush.msra.mxu0 %v737
    %v739 = vand.u32 %v646, 4294901760
    %v740 = vsub.f32 %v646, %v739
    %v741 = vand.u32 %v740, 4294901760
    %v742 = vsub.f32 %v740, %v741
    %v743 = vand.u32 %v742, 4294901760
    %744 = vmatpush.msra.mxu0 %v743
    %v745 = vand.u32 %v645, 4294901760
    %v746 = vsub.f32 %v645, %v745
    %v747 = vand.u32 %v746, 4294901760
    %v748 = vsub.f32 %v746, %v747
    %v749 = vand.u32 %v748, 4294901760
    %750 = vmatpush.msra.mxu0 %v749
    %v751 = vand.u32 %v644, 4294901760
    %v752 = vsub.f32 %v644, %v751
    %v753 = vand.u32 %v752, 4294901760
    %v754 = vsub.f32 %v752, %v753
    %v755 = vand.u32 %v754, 4294901760
    %756 = vmatpush.msra.mxu0 %v755
    %v757 = vand.u32 %v643, 4294901760
    %v758 = vsub.f32 %v643, %v757
    %v759 = vand.u32 %v758, 4294901760
    %v760 = vsub.f32 %v758, %v759
    %v761 = vand.u32 %v760, 4294901760
    %762 = vmatpush.msra.mxu0 %v761
    %v763 = vand.u32 %v642, 4294901760
    %v764 = vsub.f32 %v642, %v763
    %v765 = vand.u32 %v764, 4294901760
    %v766 = vsub.f32 %v764, %v765
    %v767 = vand.u32 %v766, 4294901760
    %768 = vmatpush.msra.mxu0 %v767
    %v769 = vand.u32 %v641, 4294901760
    %v770 = vsub.f32 %v641, %v769
    %v771 = vand.u32 %v770, 4294901760
    %v772 = vsub.f32 %v770, %v771
    %v773 = vand.u32 %v772, 4294901760
    %774 = vmatpush.msra.mxu0 %v773
    %v775 = vand.u32 %v640, 4294901760
    %v776 = vsub.f32 %v640, %v775
    %v777 = vand.u32 %v776, 4294901760
    %v778 = vsub.f32 %v776, %v777
    %v779 = vand.u32 %v778, 4294901760
    %780 = vmatpush.msra.mxu0 %v779
    %v781 = vand.u32 %v639, 4294901760
    %v782 = vsub.f32 %v639, %v781
    %v783 = vand.u32 %v782, 4294901760
    %v784 = vsub.f32 %v782, %v783
    %v785 = vand.u32 %v784, 4294901760
    %786 = vmatpush.msra.mxu0 %v785
    %v787 = vand.u32 %v638, 4294901760
    %v788 = vsub.f32 %v638, %v787
    %v789 = vand.u32 %v788, 4294901760
    %v790 = vsub.f32 %v788, %v789
    %v791 = vand.u32 %v790, 4294901760
    %792 = vmatpush.msra.mxu0 %v791
    %v793 = vand.u32 %v637, 4294901760
    %794 = vmatmul.f32.gmra.mxu0 %v793
    %v795 = vpop.f32.mrf.mxu0
    %v796 = vadd.f32 %v695, %v795
    %797 = vdwg.mxu0
    %v798 = vand.u32 %v653, 4294901760
    %v799 = vsub.f32 %v653, %v798
    %800 = vmatpush.msra.mxu0 %v799
    %v801 = vand.u32 %v652, 4294901760
    %v802 = vsub.f32 %v652, %v801
    %803 = vmatpush.msra.mxu0 %v802
    %v804 = vand.u32 %v651, 4294901760
    %v805 = vsub.f32 %v651, %v804
    %806 = vmatpush.msra.mxu0 %v805
    %v807 = vand.u32 %v650, 4294901760
    %v808 = vsub.f32 %v650, %v807
    %809 = vmatpush.msra.mxu0 %v808
    %v810 = vand.u32 %v649, 4294901760
    %v811 = vsub.f32 %v649, %v810
    %812 = vmatpush.msra.mxu0 %v811
    %v813 = vand.u32 %v648, 4294901760
    %v814 = vsub.f32 %v648, %v813
    %815 = vmatpush.msra.mxu0 %v814
    %v816 = vand.u32 %v647, 4294901760
    %v817 = vsub.f32 %v647, %v816
    %818 = vmatpush.msra.mxu0 %v817
    %v819 = vand.u32 %v646, 4294901760
    %v820 = vsub.f32 %v646, %v819
    %821 = vmatpush.msra.mxu0 %v820
    %v822 = vand.u32 %v645, 4294901760
    %v823 = vsub.f32 %v645, %v822
    %824 = vmatpush.msra.mxu0 %v823
    %v825 = vand.u32 %v644, 4294901760
    %v826 = vsub.f32 %v644, %v825
    %827 = vmatpush.msra.mxu0 %v826
    %v828 = vand.u32 %v643, 4294901760
    %v829 = vsub.f32 %v643, %v828
    %830 = vmatpush.msra.mxu0 %v829
    %v831 = vand.u32 %v642, 4294901760
    %v832 = vsub.f32 %v642, %v831
    %833 = vmatpush.msra.mxu0 %v832
    %v834 = vand.u32 %v641, 4294901760
    %v835 = vsub.f32 %v641, %v834
    %836 = vmatpush.msra.mxu0 %v835
    %v837 = vand.u32 %v640, 4294901760
    %v838 = vsub.f32 %v640, %v837
    %839 = vmatpush.msra.mxu0 %v838
    %v840 = vand.u32 %v639, 4294901760
    %v841 = vsub.f32 %v639, %v840
    %842 = vmatpush.msra.mxu0 %v841
    %v843 = vand.u32 %v638, 4294901760
    %v844 = vsub.f32 %v638, %v843
    %845 = vmatpush.msra.mxu0 %v844
    %v846 = vand.u32 %v637, 4294901760
    %v847 = vsub.f32 %v637, %v846
    %848 = vmatmul.f32.gmra.mxu0 %v847
    %v849 = vpop.f32.mrf.mxu0
    %v850 = vadd.f32 %v796, %v849
    %851 = vdwg.mxu0
    %v852 = vand.u32 %v653, 4294901760
    %853 = vmatpush.msra.mxu0 %v852
    %v854 = vand.u32 %v652, 4294901760
    %855 = vmatpush.msra.mxu0 %v854
    %v856 = vand.u32 %v651, 4294901760
    %857 = vmatpush.msra.mxu0 %v856
    %v858 = vand.u32 %v650, 4294901760
    %859 = vmatpush.msra.mxu0 %v858
    %v860 = vand.u32 %v649, 4294901760
    %861 = vmatpush.msra.mxu0 %v860
    %v862 = vand.u32 %v648, 4294901760
    %863 = vmatpush.msra.mxu0 %v862
    %v864 = vand.u32 %v647, 4294901760
    %865 = vmatpush.msra.mxu0 %v864
    %v866 = vand.u32 %v646, 4294901760
    %867 = vmatpush.msra.mxu0 %v866
    %v868 = vand.u32 %v645, 4294901760
    %869 = vmatpush.msra.mxu0 %v868
    %v870 = vand.u32 %v644, 4294901760
    %871 = vmatpush.msra.mxu0 %v870
    %v872 = vand.u32 %v643, 4294901760
    %873 = vmatpush.msra.mxu0 %v872
    %v874 = vand.u32 %v642, 4294901760
    %875 = vmatpush.msra.mxu0 %v874
    %v876 = vand.u32 %v641, 4294901760
    %877 = vmatpush.msra.mxu0 %v876
    %v878 = vand.u32 %v640, 4294901760
    %879 = vmatpush.msra.mxu0 %v878
    %v880 = vand.u32 %v639, 4294901760
    %881 = vmatpush.msra.mxu0 %v880
    %v882 = vand.u32 %v638, 4294901760
    %883 = vmatpush.msra.mxu0 %v882
    %v884 = vand.u32 %v637, 4294901760
    %v885 = vsub.f32 %v637, %v884
    %v886 = vand.u32 %v885, 4294901760
    %887 = vmatmul.f32.gmra.mxu0 %v886
    %v888 = vpop.f32.mrf.mxu0
    %v889 = vadd.f32 %v850, %v888
    %890 = vdwg.mxu0
    %v891 = vand.u32 %v653, 4294901760
    %v892 = vsub.f32 %v653, %v891
    %v893 = vand.u32 %v892, 4294901760
    %894 = vmatpush.msra.mxu0 %v893
    %v895 = vand.u32 %v652, 4294901760
    %v896 = vsub.f32 %v652, %v895
    %v897 = vand.u32 %v896, 4294901760
    %898 = vmatpush.msra.mxu0 %v897
    %v899 = vand.u32 %v651, 4294901760
    %v900 = vsub.f32 %v651, %v899
    %v901 = vand.u32 %v900, 4294901760
    %902 = vmatpush.msra.mxu0 %v901
    %v903 = vand.u32 %v650, 4294901760
    %v904 = vsub.f32 %v650, %v903
    %v905 = vand.u32 %v904, 4294901760
    %906 = vmatpush.msra.mxu0 %v905
    %v907 = vand.u32 %v649, 4294901760
    %v908 = vsub.f32 %v649, %v907
    %v909 = vand.u32 %v908, 4294901760
    %910 = vmatpush.msra.mxu0 %v909
    %v911 = vand.u32 %v648, 4294901760
    %v912 = vsub.f32 %v648, %v911
    %v913 = vand.u32 %v912, 4294901760
    %914 = vmatpush.msra.mxu0 %v913
    %v915 = vand.u32 %v647, 4294901760
    %v916 = vsub.f32 %v647, %v915
    %v917 = vand.u32 %v916, 4294901760
    %918 = vmatpush.msra.mxu0 %v917
    %v919 = vand.u32 %v646, 4294901760
    %v920 = vsub.f32 %v646, %v919
    %v921 = vand.u32 %v920, 4294901760
    %922 = vmatpush.msra.mxu0 %v921
    %v923 = vand.u32 %v645, 4294901760
    %v924 = vsub.f32 %v645, %v923
    %v925 = vand.u32 %v924, 4294901760
    %926 = vmatpush.msra.mxu0 %v925
    %v927 = vand.u32 %v644, 4294901760
    %v928 = vsub.f32 %v644, %v927
    %v929 = vand.u32 %v928, 4294901760
    %930 = vmatpush.msra.mxu0 %v929
    %v931 = vand.u32 %v643, 4294901760
    %v932 = vsub.f32 %v643, %v931
    %v933 = vand.u32 %v932, 4294901760
    %934 = vmatpush.msra.mxu0 %v933
    %v935 = vand.u32 %v642, 4294901760
    %v936 = vsub.f32 %v642, %v935
    %v937 = vand.u32 %v936, 4294901760
    %938 = vmatpush.msra.mxu0 %v937
    %v939 = vand.u32 %v641, 4294901760
    %v940 = vsub.f32 %v641, %v939
    %v941 = vand.u32 %v940, 4294901760
    %942 = vmatpush.msra.mxu0 %v941
    %v943 = vand.u32 %v640, 4294901760
    %v944 = vsub.f32 %v640, %v943
    %v945 = vand.u32 %v944, 4294901760
    %946 = vmatpush.msra.mxu0 %v945
    %v947 = vand.u32 %v639, 4294901760
    %v948 = vsub.f32 %v639, %v947
    %v949 = vand.u32 %v948, 4294901760
    %950 = vmatpush.msra.mxu0 %v949
    %v951 = vand.u32 %v638, 4294901760
    %v952 = vsub.f32 %v638, %v951
    %v953 = vand.u32 %v952, 4294901760
    %954 = vmatpush.msra.mxu0 %v953
    %v955 = vand.u32 %v637, 4294901760
    %956 = vmatmul.f32.gmra.mxu0 %v955
    %v957 = vpop.f32.mrf.mxu0
    %v958 = vadd.f32 %v889, %v957
    %959 = vdwg.mxu0
    %v960 = vand.u32 %v653, 4294901760
    %961 = vmatpush.msra.mxu0 %v960
    %v962 = vand.u32 %v652, 4294901760
    %963 = vmatpush.msra.mxu0 %v962
    %v964 = vand.u32 %v651, 4294901760
    %965 = vmatpush.msra.mxu0 %v964
    %v966 = vand.u32 %v650, 4294901760
    %967 = vmatpush.msra.mxu0 %v966
    %v968 = vand.u32 %v649, 4294901760
    %969 = vmatpush.msra.mxu0 %v968
    %v970 = vand.u32 %v648, 4294901760
    %971 = vmatpush.msra.mxu0 %v970
    %v972 = vand.u32 %v647, 4294901760
    %973 = vmatpush.msra.mxu0 %v972
    %v974 = vand.u32 %v646, 4294901760
    %975 = vmatpush.msra.mxu0 %v974
    %v976 = vand.u32 %v645, 4294901760
    %977 = vmatpush.msra.mxu0 %v976
    %v978 = vand.u32 %v644, 4294901760
    %979 = vmatpush.msra.mxu0 %v978
    %v980 = vand.u32 %v643, 4294901760
    %981 = vmatpush.msra.mxu0 %v980
    %v982 = vand.u32 %v642, 4294901760
    %983 = vmatpush.msra.mxu0 %v982
    %v984 = vand.u32 %v641, 4294901760
    %985 = vmatpush.msra.mxu0 %v984
    %v986 = vand.u32 %v640, 4294901760
    %987 = vmatpush.msra.mxu0 %v986
    %v988 = vand.u32 %v639, 4294901760
    %989 = vmatpush.msra.mxu0 %v988
    %v990 = vand.u32 %v638, 4294901760
    %991 = vmatpush.msra.mxu0 %v990
    %v992 = vand.u32 %v637, 4294901760
    %993 = vmatmul.f32.gmra.mxu0 %v992
    %v994 = vpop.f32.mrf.mxu0
    %v995 = vadd.f32 %v958, %v994
    %996 = vdwg.mxu0
    %v997 = vlaneseq
    %v998 = vand.u32 %v997, 127
    %vm999 = vcmp.ge.s32.totalorder %v998, 1
    %vm1000 = vcmp.le.s32.totalorder %v998, 8
    %vm1001 = vmand %vm999, %vm1000
    %v1002 = vsel %vm1001, %v995, -1e+30
    %1003 = vmax.xlane.f32.xlu0 %v1002
    %v1004 = vpop.xlane.xlu0 %1003
    %v1005 = vsub.f32 %v1002, %v1004
    %v1006 = vmul.f32 %v1005, 1.442695
    %v1007 = vpow.pop %v1006
    %v1008 = vsel %vm1001, %v1007, 0.0
    %1009 = vadd.xlane.f32.xlu0 %v1008
    %v1010 = vpop.xlane.xlu0 %1009
    %v1011 = vlog2.pop %v1010
    %v1012 = vmul.f32 %v1011, 0.6931472
    %vm1013 = vcmp.eq.f32.partialorder %v1002, %v1004
    %vm1014 = vmand %vm1001, %vm1013
    %v1015 = vsel %vm1014, %v998, 9
    %v1016 = vand.u32 %v1015, 65535
    %v1017 = vshra.s32 %v1015, 16
    %v1018 = vcvt.s32.f32 %v1016
    %v1019 = vcvt.s32.f32 %v1017
    %1020 = vmin.xlane.f32.xlu0 %v1019
    %v1021 = vpop.xlane.xlu0 %1020
    %vm1022 = vcmp.eq.f32.partialorder %v1019, %v1021
    %v1023 = vsel %vm1022, %v1018, inf
    %1024 = vmin.xlane.f32.xlu0 %v1023
    %v1025 = vpop.xlane.xlu0 %1024
    %v1026 = vcvt.f32.s32 %v1025
    %v1027 = vcvt.f32.s32 %v1021
    %v1028 = vshll.u32 %v1027, 16
    %v1029 = vadd.s32 %v1028, %v1026
    %vm1030 = vcmp.eq.s32.totalorder %v998, %v1029
    %v1031 = vsub.f32 %v1005, %v1012
    %v1032 = vsel %vm1030, %v1031, 0.0
    %1033 = vadd.xlane.f32.xlu0 %v1032
    %v1034 = vpop.xlane.xlu0 %1033
    %v1035 = vsub.s32 %v1029, 1
    %v1036 = vcvt.s32.f32 %v1035
    %vm1037 = vcmp.eq.s32.totalorder %v998, 0
    %1039 = vset.pattern.permute.xlu0 0
    %1040 = vperm.xlu0 %1039, %v995
    %v1041 = vpop.permute.xlu0 %1040
    %v1043 = vsel %vm1037, %v1041, 0.0
    %vm1044 = vcmp.eq.s32.totalorder %v998, 1
    %v1045 = vsel %vm1044, %v1034, %v1043
    %vm1046 = vcmp.eq.s32.totalorder %v998, 2
    %v1047 = vsel %vm1046, %v1036, %v1045
    %vm1048 = vcmask 23552
    %1049 = vst.msk [vmem:[%s5] sm:$0xff] %vm1048, %v1047
    // Predicated region
    $region38: #{agent_act.1} parent=1 // pred_check
      _
    $region39: #{agent_act.1} parent=1 // pred_check_branch
      %1051 = sbr.rel (0) target = $region41
    $region40: #{agent_act.1} parent=1 // pred_region
      _
    $region41: #{agent_act.1} parent=1 // pred_fallthru
      _
    // Predicated region
    $region42: #{agent_act.1} parent=1 // pred_check
      _
    $region43: #{agent_act.1} parent=1 // pred_check_branch
      %1053 = sbr.rel (0) target = $region45
    $region44: #{agent_act.1} parent=1 // pred_region
      _
    $region45: #{agent_act.1} parent=1 // pred_fallthru
      _
    %1054 = vsyncpa [#allocation3], 1
    %1055 = vsyncpa [#allocation5], 1
    %1056 = vsyncpa [#allocation8], 1

</llo_original>
